<compile_context>
chip_gen: v7x
topology: tpu7x:2x2x1
jax: 0.10.0
libtpu: 0.0.40
codegen_flags: <defaults>
</compile_context>

<pallas_src>
import functools

import jax
import jax.numpy as jnp
from jax.experimental import pallas as pl
from jax.experimental.pallas import tpu as pltpu

EMB_DIM = 32
OUT_FEAT = 32          # must equal EMB_DIM (linear output is added to relation emb)
MARGIN = 5.0
PD_EPS = 1e-6          # nn.PairwiseDistance default eps (added to the difference)
NORM_EPS = 1e-12       # F.normalize default eps


def _round_up(x, m):
    return ((x + m - 1) // m) * m


def _choose_blocking(batch, block_b):
    """Pick a 128-aligned lane tile; force >=2 grid steps for larger batches
    so the 'parallel' batch axis can shard across v7x's two TensorCores."""
    block_b = max(128, (block_b // 128) * 128)
    b_min = _round_up(batch, 128)
    if b_min <= 256:
        block_b = b_min                                   # tiny batch: 1 step
    else:
        half = _round_up(-(-b_min // 2), 128)             # ceil(b_min/2) -> 128-aligned
        block_b = min(block_b, half)                      # guarantees grid >= 2
    b_pad = _round_up(batch, block_b)
    return block_b, b_pad


def transr_kernel(b_ref, head_ref, tail_ref, rel_ref, pos_ref, w_ref, out_ref):
    """All feature-major: (D, block_b) with batch on the 128-lane axis."""
    f32 = jnp.float32
    block_b = head_ref.shape[1]

    # Validity mask for this batch tile (padded lanes beyond the true B drop out).
    col0 = pl.program_id(0) * block_b
    cols = col0 + jax.lax.broadcasted_iota(jnp.int32, (1, block_b), 1)
    valid = (cols < b_ref[0]).astype(f32)                       # (1, Bb)

    # head - tail = (head_emb - tail_emb) @ W^T  (bias cancels) in transposed form.
    delta = head_ref[...] - tail_ref[...]                       # (D, Bb) compute dtype
    proj = jnp.dot(w_ref[...], delta,                           # (F, D) @ (D, Bb)
                   preferred_element_type=f32)                  # (F, Bb) f32 acc

    # F.normalize(relation_emb, dim=1): feature axis is axis 0 here.  f32 math.
    rel = rel_ref[...].astype(f32)                              # (D, Bb)
    ss = jnp.sum(rel * rel, axis=0, keepdims=True)              # (1, Bb)
    rel_n = rel * jax.lax.rsqrt(jnp.maximum(ss, NORM_EPS * NORM_EPS))

    # PairwiseDistance(p=2): ||head + rel_n - tail + eps||_2 per batch column.
    diff = proj + rel_n + PD_EPS                                # (F, Bb) f32
    dist = jnp.sqrt(jnp.sum(diff * diff, axis=0, keepdims=True))  # (1, Bb)

    pos = pos_ref[...].astype(f32)                              # (1, Bb) in {0,1}
    neg = valid * (1.0 - pos)                                   # derived in-kernel
    pos_sum = jnp.sum(dist * pos, axis=1, keepdims=True)        # (1, 1)
    neg_sum = jnp.sum(dist * neg, axis=1, keepdims=True)        # (1, 1)

    # Lane-dense (8,128) partial tile: row 0 = pos_sum, row 1 = neg_sum
    # (broadcast across lanes); the tiny epilogue reads lane 0 in the wrapper.
    rows = jax.lax.broadcasted_iota(jnp.int32, (8, 128), 0)
    tile = (jnp.where(rows == 0, pos_sum, 0.0)
            + jnp.where(rows == 1, neg_sum, 0.0))
    out_ref[0] = tile


def transr_forward(ent_table_t, rel_table_t, w, head_idx, tail_idx, rel_idx, mask,
                   margin=MARGIN, block_b=1024, compute_dtype=jnp.bfloat16):
    """TransR forward.  Tables are maintained pre-transposed:
       ent_table_t: (D, entity_num), rel_table_t: (D, relation_num).
       w: nn.Linear weight in its native (out_feat, emb_dim) layout."""
    B = head_idx.shape[0]
    D = ent_table_t.shape[0]
    F = w.shape[0]

    block_b, b_pad = _choose_blocking(B, block_b)
    grid_b = b_pad // block_b
    pad = b_pad - B

    # Pad the *indices* (not the gathered arrays): one gather emits the
    # lane-padded (D, b_pad) operand directly — no transpose / pad copies.
    if pad:
        head_idx = jnp.pad(head_idx, (0, pad))
        tail_idx = jnp.pad(tail_idx, (0, pad))
        rel_idx = jnp.pad(rel_idx, (0, pad))
    headT = jnp.take(ent_table_t, head_idx, axis=1).astype(compute_dtype)  # (D, b_pad)
    tailT = jnp.take(ent_table_t, tail_idx, axis=1).astype(compute_dtype)
    relT = jnp.take(rel_table_t, rel_idx, axis=1).astype(compute_dtype)
    w_c = w.astype(compute_dtype)

    pos = mask.astype(jnp.float32)
    if pad:
        pos = jnp.pad(pos, (0, pad))          # padded lanes are "not positive"
    pos = pos.reshape(1, b_pad)

    b_len = jnp.array([B], dtype=jnp.int32)   # scalar-prefetched true batch size

    itemsize = jnp.dtype(compute_dtype).itemsize
    cost = pl.CostEstimate(
        flops=2 * F * D * b_pad + 12 * D * b_pad,
        transcendentals=2 * b_pad,                       # rsqrt + sqrt per column
        bytes_accessed=(3 * D * b_pad * itemsize + b_pad * 4
                        + F * D * itemsize + grid_b * 8 * 128 * 4 + 4),
    )

    partials = pl.pallas_call(
        transr_kernel,
        out_shape=jax.ShapeDtypeStruct((grid_b, 8, 128), jnp.float32),
        grid_spec=pltpu.PrefetchScalarGridSpec(
            num_scalar_prefetch=1,                       # b_len -> SMEM
            grid=(grid_b,),
            in_specs=[
                pl.BlockSpec((D, block_b), lambda i, b: (0, i)),   # headT
                pl.BlockSpec((D, block_b), lambda i, b: (0, i)),   # tailT
                pl.BlockSpec((D, block_b), lambda i, b: (0, i)),   # relT
                pl.BlockSpec((1, block_b), lambda i, b: (0, i)),   # pos mask
                pl.BlockSpec((F, D), lambda i, b: (0, 0)),         # W (resident)
            ],
            out_specs=pl.BlockSpec((1, 8, 128), lambda i, b: (i, 0, 0)),
        ),
        compiler_params=pltpu.CompilerParams(
            dimension_semantics=("parallel",)),
        cost_estimate=cost,
    )(b_len, headT, tailT, relT, pos, w_c)

    # Tiny scalar epilogue in plain JAX (counts are independent of distances).
    totals = jnp.sum(partials, axis=0)                   # (8, 128)
    pos_sum, neg_sum = totals[0, 0], totals[1, 0]
    pos_cnt = jnp.sum(mask.astype(jnp.float32))
    neg_cnt = B - pos_cnt
    dis_pos = jnp.where(pos_cnt > 0.0, pos_sum / jnp.maximum(pos_cnt, 1.0), 0.0)
    dis_neg = jnp.where(neg_cnt > 0.0, neg_sum / jnp.maximum(neg_cnt, 1.0), 0.0)
    return jnp.maximum(0.0, dis_pos - dis_neg + margin).reshape(1)


if __name__ == "__main__":
    entity_num = 16
    relation_num = 8
    batch = 8

    key = jax.random.PRNGKey(0)
    k_ent, k_rel, k_w, k_b, k_h, k_t, k_r, k_m = jax.random.split(key, 8)

    # Parameters (same shapes as nn.Embedding / nn.Linear).
    ent_table = jax.random.normal(k_ent, (entity_num, EMB_DIM), jnp.float32)
    rel_table = jax.random.normal(k_rel, (relation_num, EMB_DIM), jnp.float32)
    bound = 1.0 / (EMB_DIM ** 0.5)
    w = jax.random.uniform(k_w, (OUT_FEAT, EMB_DIM), jnp.float32, -bound, bound)
    bias = jax.random.uniform(k_b, (OUT_FEAT,), jnp.float32, -bound, bound)
    # NOTE: bias only appears in the reference; it cancels in head - tail.

    # Tables kept pre-transposed (D, E) so gathers emit feature-major operands.
    ent_table_t = ent_table.T
    rel_table_t = rel_table.T

    # Example batch.
    head_idx = jax.random.randint(k_h, (batch,), 0, entity_num)
    tail_idx = jax.random.randint(k_t, (batch,), 0, entity_num)
    rel_idx = jax.random.randint(k_r, (batch,), 0, relation_num)
    mask = jax.random.bernoulli(k_m, 0.5, (batch,))

    fwd_f32 = jax.jit(functools.partial(transr_forward, compute_dtype=jnp.float32))
    fwd_bf16 = jax.jit(transr_forward)   # bf16 input streams (default fast path)

    out_f32 = fwd_f32(ent_table_t, rel_table_t, w, head_idx, tail_idx, rel_idx, mask)
    out_bf16 = fwd_bf16(ent_table_t, rel_table_t, w, head_idx, tail_idx, rel_idx, mask)
    jax.block_until_ready((out_f32, out_bf16))

    # Plain-JAX reference, including the (mathematically dead) bias.
    he = jnp.take(ent_table, head_idx, axis=0)
    te = jnp.take(ent_table, tail_idx, axis=0)
    re = jnp.take(rel_table, rel_idx, axis=0)
    h = he @ w.T + bias
    t_ = te @ w.T + bias
    rn = re / jnp.maximum(jnp.linalg.norm(re, axis=1, keepdims=True), NORM_EPS)
    d = jnp.sqrt(jnp.sum((h + rn - t_ + PD_EPS) ** 2, axis=1))
    m = mask.astype(jnp.float32)
    dp = jnp.where(m.sum() > 0, (d * m).sum() / jnp.maximum(m.sum(), 1.0), 0.0)
    dn = jnp.where((1 - m).sum() > 0,
                   (d * (1 - m)).sum() / jnp.maximum((1 - m).sum(), 1.0), 0.0)
    ref = jnp.maximum(0.0, dp - dn + MARGIN)

    assert jnp.allclose(out_f32[0], ref, atol=1e-4, rtol=1e-4), (out_f32, ref)
    assert jnp.allclose(out_bf16[0], ref, atol=1e-1, rtol=5e-2), (out_bf16, ref)

    print("KERNEL_OK")
</pallas_src>

<mosaic_0001>
module attributes {stable_mosaic.version = 11 : i64} {
  func.func @transr_kernel(%arg0: i32, %arg1: memref<1xi32, #tpu.memory_space<smem>>, %arg2: memref<32x128xf32, #tpu.memory_space<vmem>>, %arg3: memref<32x128xf32, #tpu.memory_space<vmem>>, %arg4: memref<32x128xf32, #tpu.memory_space<vmem>>, %arg5: memref<1x128xf32, #tpu.memory_space<vmem>>, %arg6: memref<32x32xf32, #tpu.memory_space<vmem>>, %arg7: memref<1x8x128xf32, #tpu.memory_space<vmem>>) attributes {dimension_semantics = [#tpu.dimension_semantics<parallel>], iteration_bounds = array<i64: 1>, scalar_prefetch = 1 : i64, scratch_operands = 0 : i64, tpu.core_type = #tpu.core_type<tc>, window_params = [{transform_indices = @transform_0, window_bounds = array<i64: 32, 128>}, {transform_indices = @transform_1, window_bounds = array<i64: 32, 128>}, {transform_indices = @transform_2, window_bounds = array<i64: 32, 128>}, {transform_indices = @transform_3, window_bounds = array<i64: 1, 128>}, {pipeline_mode = #tpu.pipeline_mode<synchronous>, transform_indices = @transform_4, window_bounds = array<i64: 32, 32>}, {transform_indices = @transform_5, window_bounds = array<i64: 1, 8, 128>}]} {
    %c128_i32 = arith.constant 128 : i32
    %0 = arith.muli %arg0, %c128_i32 : i32
    %1 = tpu.iota {dimensions = array<i32: 1>} : vector<1x128xi32>
    %2 = vector.broadcast %0 : i32 to vector<1x128xi32>
    %3 = arith.addi %2, %1 : vector<1x128xi32>
    %c0 = arith.constant 0 : index
    %4 = memref.load %arg1[%c0] : memref<1xi32, #tpu.memory_space<smem>>
    %5 = vector.broadcast %4 : i32 to vector<1x128xi32>
    %6 = arith.cmpi slt, %3, %5 : vector<1x128xi32>
    %7 = arith.extui %6 : vector<1x128xi1> to vector<1x128xi32>
    %8 = arith.sitofp %7 : vector<1x128xi32> to vector<1x128xf32>
    %c0_0 = arith.constant 0 : index
    %c0_1 = arith.constant 0 : index
    %9 = vector.load %arg2[%c0_0, %c0_1] : memref<32x128xf32, #tpu.memory_space<vmem>>, vector<32x128xf32>
    %c0_2 = arith.constant 0 : index
    %c0_3 = arith.constant 0 : index
    %10 = vector.load %arg3[%c0_2, %c0_3] : memref<32x128xf32, #tpu.memory_space<vmem>>, vector<32x128xf32>
    %11 = arith.subf %9, %10 : vector<32x128xf32>
    %c0_4 = arith.constant 0 : index
    %c0_5 = arith.constant 0 : index
    %12 = vector.load %arg6[%c0_4, %c0_5] : memref<32x32xf32, #tpu.memory_space<vmem>>, vector<32x32xf32>
    %cst = arith.constant dense<0.000000e+00> : vector<32x128xf32>
    %13 = tpu.matmul %12, %11, %cst {dimension_numbers = #tpu.dot_dimension_numbers<[1], [0], [0], [1], [0, 0, 1, 1], [], []>} : vector<32x32xf32>, vector<32x128xf32>, vector<32x128xf32> -> vector<32x128xf32>
    %c0_6 = arith.constant 0 : index
    %c0_7 = arith.constant 0 : index
    %14 = vector.load %arg4[%c0_6, %c0_7] : memref<32x128xf32, #tpu.memory_space<vmem>>, vector<32x128xf32>
    %15 = arith.mulf %14, %14 : vector<32x128xf32>
    %cst_8 = arith.constant dense<0.000000e+00> : vector<128xf32>
    %16 = vector.multi_reduction <add>, %15, %cst_8 [0] : vector<32x128xf32> to vector<128xf32>
    %17 = vector.shape_cast %16 : vector<128xf32> to vector<1x128xf32>
    %cst_9 = arith.constant 1.000000e-24 : f32
    %18 = vector.broadcast %cst_9 : f32 to vector<1x128xf32>
    %19 = arith.maximumf %17, %18 : vector<1x128xf32>
    %20 = math.rsqrt %19 : vector<1x128xf32>
    %21 = vector.broadcast %20 : vector<1x128xf32> to vector<32x128xf32>
    %22 = arith.mulf %14, %21 : vector<32x128xf32>
    %23 = arith.addf %13, %22 : vector<32x128xf32>
    %cst_10 = arith.constant 9.99999997E-7 : f32
    %24 = vector.broadcast %cst_10 : f32 to vector<32x128xf32>
    %25 = arith.addf %23, %24 : vector<32x128xf32>
    %26 = arith.mulf %25, %25 : vector<32x128xf32>
    %cst_11 = arith.constant dense<0.000000e+00> : vector<128xf32>
    %27 = vector.multi_reduction <add>, %26, %cst_11 [0] : vector<32x128xf32> to vector<128xf32>
    %28 = vector.shape_cast %27 : vector<128xf32> to vector<1x128xf32>
    %29 = math.sqrt %28 : vector<1x128xf32>
    %c0_12 = arith.constant 0 : index
    %c0_13 = arith.constant 0 : index
    %30 = vector.load %arg5[%c0_12, %c0_13] : memref<1x128xf32, #tpu.memory_space<vmem>>, vector<1x128xf32>
    %cst_14 = arith.constant 1.000000e+00 : f32
    %31 = vector.broadcast %cst_14 : f32 to vector<1x128xf32>
    %32 = arith.subf %31, %30 : vector<1x128xf32>
    %33 = arith.mulf %8, %32 : vector<1x128xf32>
    %34 = arith.mulf %29, %30 : vector<1x128xf32>
    %cst_15 = arith.constant dense<0.000000e+00> : vector<1xf32>
    %35 = vector.multi_reduction <add>, %34, %cst_15 [1] : vector<1x128xf32> to vector<1xf32>
    %36 = vector.shape_cast %35 : vector<1xf32> to vector<1x1xf32>
    %37 = arith.mulf %29, %33 : vector<1x128xf32>
    %cst_16 = arith.constant dense<0.000000e+00> : vector<1xf32>
    %38 = vector.multi_reduction <add>, %37, %cst_16 [1] : vector<1x128xf32> to vector<1xf32>
    %39 = vector.shape_cast %38 : vector<1xf32> to vector<1x1xf32>
    %40 = tpu.iota {dimensions = array<i32: 0>} : vector<8x128xi32>
    %c0_i32 = arith.constant 0 : i32
    %41 = vector.broadcast %c0_i32 : i32 to vector<8x128xi32>
    %42 = arith.cmpi eq, %40, %41 : vector<8x128xi32>
    %cst_17 = arith.constant 0.000000e+00 : f32
    %43 = vector.shape_cast %36 : vector<1x1xf32> to vector<1x1xf32>
    %44 = vector.broadcast %43 : vector<1x1xf32> to vector<8x128xf32>
    %45 = vector.broadcast %cst_17 : f32 to vector<8x128xf32>
    %46 = arith.select %42, %44, %45 : vector<8x128xi1>, vector<8x128xf32>
    %c1_i32 = arith.constant 1 : i32
    %47 = vector.broadcast %c1_i32 : i32 to vector<8x128xi32>
    %48 = arith.cmpi eq, %40, %47 : vector<8x128xi32>
    %cst_18 = arith.constant 0.000000e+00 : f32
    %49 = vector.shape_cast %39 : vector<1x1xf32> to vector<1x1xf32>
    %50 = vector.broadcast %49 : vector<1x1xf32> to vector<8x128xf32>
    %51 = vector.broadcast %cst_18 : f32 to vector<8x128xf32>
    %52 = arith.select %48, %50, %51 : vector<8x128xi1>, vector<8x128xf32>
    %53 = arith.addf %46, %52 : vector<8x128xf32>
    %c0_19 = arith.constant 0 : index
    %c0_20 = arith.constant 0 : index
    %c0_21 = arith.constant 0 : index
    %54 = vector.load %arg7[%c0_19, %c0_20, %c0_21] : memref<1x8x128xf32, #tpu.memory_space<vmem>>, vector<1x8x128xf32>
    %55 = vector.shape_cast %54 : vector<1x8x128xf32> to vector<8x128xf32>
    %56 = vector.shape_cast %53 : vector<8x128xf32> to vector<1x8x128xf32>
    tpu.vector_store %arg7[%c0_19, %c0_20, %c0_21], %56 {strides = array<i32>} : memref<1x8x128xf32, #tpu.memory_space<vmem>>, vector<1x8x128xf32>,
    return
  }
  func.func @transform_0(%arg0: i32, %arg1: memref<1xi32, #tpu.memory_space<smem>>) -> (i32, i32) {
    %c0_i32 = arith.constant 0 : i32
    %c0_i32_0 = arith.constant 0 : i32
    return %c0_i32, %arg0 : i32, i32
  }
  func.func @transform_1(%arg0: i32, %arg1: memref<1xi32, #tpu.memory_space<smem>>) -> (i32, i32) {
    %c0_i32 = arith.constant 0 : i32
    %c0_i32_0 = arith.constant 0 : i32
    return %c0_i32, %arg0 : i32, i32
  }
  func.func @transform_2(%arg0: i32, %arg1: memref<1xi32, #tpu.memory_space<smem>>) -> (i32, i32) {
    %c0_i32 = arith.constant 0 : i32
    %c0_i32_0 = arith.constant 0 : i32
    return %c0_i32, %arg0 : i32, i32
  }
  func.func @transform_3(%arg0: i32, %arg1: memref<1xi32, #tpu.memory_space<smem>>) -> (i32, i32) {
    %c0_i32 = arith.constant 0 : i32
    %c0_i32_0 = arith.constant 0 : i32
    return %c0_i32, %arg0 : i32, i32
  }
  func.func @transform_4(%arg0: i32, %arg1: memref<1xi32, #tpu.memory_space<smem>>) -> (i32, i32) {
    %c0_i32 = arith.constant 0 : i32
    %c0_i32_0 = arith.constant 0 : i32
    %c0_i32_1 = arith.constant 0 : i32
    return %c0_i32, %c0_i32_0 : i32, i32
  }
  func.func @transform_5(%arg0: i32, %arg1: memref<1xi32, #tpu.memory_space<smem>>) -> (i32, i32, i32) {
    %c0_i32 = arith.constant 0 : i32
    %c0_i32_0 = arith.constant 0 : i32
    %c0_i32_1 = arith.constant 0 : i32
    return %arg0, %c0_i32, %c0_i32_0 : i32, i32, i32
  }
}

</mosaic_0001>

<llo_original>
// kernel: transr_forward.1
$region0: #{transr_forward.1}
  #allocation0 [shape = 'u32[]', space=smem, size = 0x4, offset = 0x4, fixed_abs, tag = 'smem constant byte address 0x4 - core index']
  #allocation1 [shape = 'u32[144,128]{1,0:T(1,128)}', space=vmem, size = 0x12000, scoped, tag = 'internal scratch']
  #allocation2 [shape = 's32[1]{0}', space=sflag, size = 0x4, scoped, tag = 'scoped memory for transr_forward.1']
  #allocation3 [shape = 's32[1]{0:T(128)S(6)}', space=smem, size = 0x200, scoped, tag = 'prefetched SMEM operand 0']
  %s0 = inlined_call_operand.<no memory space> [shape: s32[1], index: 0, kind: input, shape index: {}]
  %s1 = inlined_call_operand.vmem [shape: f32[32,128], index: 1, kind: input, shape index: {}]
  %s2 = inlined_call_operand.vmem [shape: f32[32,128], index: 2, kind: input, shape index: {}]
  %s3 = inlined_call_operand.vmem [shape: f32[32,128], index: 3, kind: input, shape index: {}]
  %s4 = inlined_call_operand.vmem [shape: f32[1,128], index: 4, kind: input, shape index: {}]
  %s5 = inlined_call_operand.vmem [shape: f32[32,32], index: 5, kind: input, shape index: {}]
  %s6 = inlined_call_operand.vmem [shape: f32[1,8,128], index: 6, kind: output, shape index: {}]
  %s7 = sld [smem:[#allocation0]]
  $region30: #{transr_forward.1} parent=0
    _
  %s9 = ssub.s32 1, %s7
  %s10 = scalar_select 0, %s9, %s7
  %11 = sst [smem:[#allocation3]] %s0
  // Predicated region
  $region2: #{transr_forward.1} parent=0 // pred_check
    _
  $region3: #{transr_forward.1} parent=0 // pred_check_branch
    %13 = sbr.rel (0) target = $region5
  $region4: #{transr_forward.1} parent=0 // pred_region
    _
  $region5: #{transr_forward.1} parent=0 // pred_fallthru
    _
  // Predicated region
  $region6: #{transr_forward.1} parent=0 // pred_check
    _
  $region7: #{transr_forward.1} parent=0 // pred_check_branch
    %15 = sbr.rel (0) target = $region9
  $region8: #{transr_forward.1} parent=0 // pred_region
    _
  $region9: #{transr_forward.1} parent=0 // pred_fallthru
    _
  // Predicated region
  $region10: #{transr_forward.1} parent=0 // pred_check
    _
  $region11: #{transr_forward.1} parent=0 // pred_check_branch
    %17 = sbr.rel (0) target = $region13
  $region12: #{transr_forward.1} parent=0 // pred_region
    _
  $region13: #{transr_forward.1} parent=0 // pred_fallthru
    _
  // Predicated region
  $region14: #{transr_forward.1} parent=0 // pred_check
    _
  $region15: #{transr_forward.1} parent=0 // pred_check_branch
    %19 = sbr.rel (0) target = $region17
  $region16: #{transr_forward.1} parent=0 // pred_region
    _
  $region17: #{transr_forward.1} parent=0 // pred_fallthru
    _
  // Predicated region
  $region18: #{transr_forward.1} parent=0 // pred_check
    _
  $region19: #{transr_forward.1} parent=0 // pred_check_branch
    %21 = sbr.rel (0) target = $region21
  $region20: #{transr_forward.1} parent=0 // pred_region
    _
  $region21: #{transr_forward.1} parent=0 // pred_fallthru
    _
  %s22 = smul.u32 0, 128
  %v23 = vlaneseq
  %v24 = vand.u32 %v23, 127
  %v25 = vstv %s22
  %v26 = vadd.s32 %v25, %v24
  %s27 = sld [smem:[#allocation3]]
  %v28 = vstv %s27
  %vm29 = vcmp.lt.s32.totalorder %v26, %v28
  %v30 = vsel %vm29, 1, 0
  %v31 = vcvt.s32.f32 %v30
  %v32 = vld [vmem:[%s1] sm:$0xff]
  %v33 = vld [vmem:[%s1 + $0x8] sm:$0xff]
  %v34 = vld [vmem:[%s1 + $0x10] sm:$0xff]
  %v35 = vld [vmem:[%s1 + $0x18] sm:$0xff]
  %v36 = vld [vmem:[%s2] sm:$0xff]
  %v37 = vld [vmem:[%s2 + $0x8] sm:$0xff]
  %v38 = vld [vmem:[%s2 + $0x10] sm:$0xff]
  %v39 = vld [vmem:[%s2 + $0x18] sm:$0xff]
  %v40 = vsub.f32 %v32, %v36
  %v41 = vsub.f32 %v33, %v37
  %v42 = vsub.f32 %v34, %v38
  %v43 = vsub.f32 %v35, %v39
  %v44 = vld [vmem:[%s5] sm:$0xff]
  %v45 = vld [vmem:[%s5 + $0x8] sm:$0xff]
  %v46 = vld [vmem:[%s5 + $0x10] sm:$0xff]
  %v47 = vld [vmem:[%s5 + $0x18] sm:$0xff]
  %v48 = vld [vmem:[%s3] sm:$0xff]
  %v49 = vld [vmem:[%s3 + $0x8] sm:$0xff]
  %v50 = vld [vmem:[%s3 + $0x10] sm:$0xff]
  %v51 = vld [vmem:[%s3 + $0x18] sm:$0xff]
  %v52 = vmul.f32 %v48, %v48
  %v53 = vmul.f32 %v49, %v49
  %v54 = vmul.f32 %v50, %v50
  %v55 = vmul.f32 %v51, %v51
  %v56 = vadd.f32 %v52, %v53
  %v57 = vadd.f32 %v56, %v54
  %v58 = vadd.f32 %v57, %v55
  %v59 = vrot.slane %v58, 4
  %v60 = vadd.f32 %v58, %v59
  %v61 = vrot.slane %v60, 2
  %v62 = vadd.f32 %v60, %v61
  %v63 = vrot.slane %v62, 1
  %v64 = vadd.f32 %v62, %v63
  %v65 = vmax.f32 %v64, 1e-24
  %v66 = vrsqrt.pop %v65
  %v67 = vmul.f32 %v48, %v66
  %v68 = vmul.f32 %v49, %v66
  %v69 = vmul.f32 %v50, %v66
  %v70 = vmul.f32 %v51, %v66
  %vm71 = vcmask 261120
  %v73 = vsel %vm71, %v44, 0
  %v76 = vsel %vm71, %v45, 0
  %v79 = vsel %vm71, %v46, 0
  %v82 = vsel %vm71, %v47, 0
  %84 = vmatprep.subr.mxu0 0.0
  %85 = vmatpush1.msra.mxu0 %v40
  %86 = vmatprep.subr.mxu0 0.0
  %87 = vmatpush1.msra.mxu0 %v41
  %88 = vmatprep.subr.mxu0 0.0
  %89 = vmatpush1.msra.mxu0 %v42
  %90 = vmatprep.subr.mxu0 0.0
  %91 = vmatpush1.msra.mxu0 %v43
  %92 = vmatprep.subr.mxu0 0.0
  %93 = vmatpush1.msra.mxu0 0.0
  %94 = vmatprep.subr.mxu0 0.0
  %95 = vmatpush1.msra.mxu0 0.0
  %96 = vmatprep.subr.mxu0 0.0
  %97 = vmatpush1.msra.mxu0 0.0
  %98 = vmatprep.subr.mxu0 0.0
  %99 = vmatpush1.msra.mxu0 0.0
  %100 = vmatprep.subr.mxu0 0.0
  %101 = vmatpush1.msra.mxu0 0.0
  %102 = vmatprep.subr.mxu0 0.0
  %103 = vmatpush1.msra.mxu0 0.0
  %104 = vmatprep.subr.mxu0 0.0
  %105 = vmatpush1.msra.mxu0 0.0
  %106 = vmatprep.subr.mxu0 0.0
  %107 = vmatpush1.msra.mxu0 0.0
  %108 = vmatprep.subr.mxu0 0.0
  %109 = vmatpush1.msra.mxu0 0.0
  %110 = vmatprep.subr.mxu0 0.0
  %111 = vmatpush1.msra.mxu0 0.0
  %112 = vmatprep.subr.mxu0 0.0
  %113 = vmatpush1.msra.mxu0 0.0
  %114 = vmatprep.subr.mxu0 0.0
  %115 = vmatpush1.msra.mxu0 0.0
  %116 = vmatprep.subr.mxu0 0.0
  %117 = vmatpush1.msra.mxu0 0.0
  %118 = vmatprep.subr.mxu0 0.0
  %119 = vmatpush1.msra.mxu0 0.0
  %120 = vmatprep.subr.mxu0 0.0
  %121 = vmatpush1.msra.mxu0 0.0
  %122 = vmatprep.subr.mxu0 0.0
  %123 = vmatpush1.msra.mxu0 0.0
  %124 = vmatprep.subr.mxu0 0.0
  %125 = vmatpush1.msra.mxu0 0.0
  %126 = vmatprep.subr.mxu0 0.0
  %127 = vmatpush1.msra.mxu0 0.0
  %128 = vmatprep.subr.mxu0 0.0
  %129 = vmatpush1.msra.mxu0 0.0
  %130 = vmatprep.subr.mxu0 0.0
  %131 = vmatpush1.msra.mxu0 0.0
  %132 = vmatprep.subr.mxu0 0.0
  %133 = vmatpush1.msra.mxu0 0.0
  %134 = vmatprep.subr.mxu0 0.0
  %135 = vmatpush1.msra.mxu0 0.0
  %136 = vmatprep.subr.mxu0 0.0
  %137 = vmatpush1.msra.mxu0 0.0
  %138 = vmatprep.subr.mxu0 0.0
  %139 = vmatpush1.msra.mxu0 0.0
  %140 = vmatprep.subr.mxu0 0.0
  %141 = vmatpush1.msra.mxu0 0.0
  %142 = vmatprep.subr.mxu0 0.0
  %143 = vmatpush1.msra.mxu0 0.0
  %144 = vmatprep.subr.mxu0 0.0
  %145 = vmatpush1.msra.mxu0 0.0
  %146 = vmatprep.subr.mxu0 0.0
  %147 = vmatpush1.msra.mxu0 0.0
  %148 = vmatprep.mubr.f32.mxu0 0.0
  %149 = vmatmul.mubr.f32.gmra.mrb[0].mxu0 %v73
  %v150 = vpop.f32.mrb[0].mxu0
  %v151 = vadd.f32 %v67, %v150
  %v152 = vpop.f32.mrb[0].mxu0
  %153 = vmatprep.mubr.f32.mxu0 0.0
  %154 = vmatmul.mubr.f32.gmra.mrb[0].mxu0 %v76
  %v155 = vpop.f32.mrb[0].mxu0
  %v156 = vadd.f32 %v68, %v155
  %v157 = vpop.f32.mrb[0].mxu0
  %158 = vmatprep.mubr.f32.mxu0 0.0
  %159 = vmatmul.mubr.f32.gmra.mrb[0].mxu0 %v79
  %v160 = vpop.f32.mrb[0].mxu0
  %v161 = vadd.f32 %v69, %v160
  %v162 = vpop.f32.mrb[0].mxu0
  %163 = vmatprep.mubr.f32.mxu0 0.0
  %164 = vmatmul.mubr.f32.gmra.mrb[0].mxu0 %v82
  %v165 = vpop.f32.mrb[0].mxu0
  %v166 = vadd.f32 %v70, %v165
  %v167 = vpop.f32.mrb[0].mxu0
  %168 = vdwg.mxu0
  %v169 = vadd.f32 %v151, 1e-06
  %v170 = vadd.f32 %v156, 1e-06
  %v171 = vadd.f32 %v161, 1e-06
  %v172 = vadd.f32 %v166, 1e-06
  %v173 = vmul.f32 %v169, %v169
  %v174 = vmul.f32 %v170, %v170
  %v175 = vmul.f32 %v171, %v171
  %v176 = vmul.f32 %v172, %v172
  %v177 = vadd.f32 %v173, %v174
  %v178 = vadd.f32 %v177, %v175
  %v179 = vadd.f32 %v178, %v176
  %v180 = vrot.slane %v179, 4
  %v181 = vadd.f32 %v179, %v180
  %v182 = vrot.slane %v181, 2
  %v183 = vadd.f32 %v181, %v182
  %v184 = vrot.slane %v183, 1
  %v185 = vadd.f32 %v183, %v184
  %v186 = vrsqrt.pop %v185
  %v187 = vmul.f32 %v185, %v186
  %vm188 = vcmp.eq.f32.partialorder %v185, inf
  %v189 = vsel %vm188, %v185, %v187
  %vm190 = vcmp.eq.f32.partialorder %v185, 0.0
  %v191 = vand.u32 %v185, 2147483648
  %v192 = vsel %vm190, %v191, %v189
  %v193 = vld [vmem:[%s4] sm:$0x1]
  %v194 = vsub.f32 1.0, %v193
  %v195 = vmul.f32 %v31, %v194
  %v196 = vmul.f32 %v192, %v193
  %vm197 = vcmask 1040384
  %v198 = vsel %vm197, %v196, 0.0
  %199 = vadd.xlane.f32.xlu0 %v198
  %v200 = vpop.xlane.xlu0 %199
  %v201 = vmul.f32 %v192, %v195
  %v202 = vsel %vm197, %v201, 0.0
  %203 = vadd.xlane.f32.xlu0 %v202
  %v204 = vpop.xlane.xlu0 %203
  %v205 = vlaneseq
  %v206 = vshrl.u32 %v205, 7
  %vm207 = vcmp.eq.s32.totalorder %v206, 0
  %v208 = vlaneseq
  %v209 = vshrl.u32 %v208, 7
  %v210 = vsub.s32 0, %v209
  %v211 = vrot.slane %v200, %v210
  %v212 = vsel %vm207, %v211, 0.0
  %vm213 = vcmp.eq.s32.totalorder %v206, 1
  %v214 = vlaneseq
  %v215 = vshrl.u32 %v214, 7
  %v216 = vsub.s32 0, %v215
  %v217 = vrot.slane %v204, %v216
  %v218 = vsel %vm213, %v217, 0.0
  %v219 = vadd.f32 %v212, %v218
  %220 = vst [vmem:[%s6] sm:$0xff] %v219
  // Predicated region
  $region22: #{transr_forward.1} parent=0 // pred_check
    _
  $region23: #{transr_forward.1} parent=0 // pred_check_branch
    %222 = sbr.rel (0) target = $region25
  $region24: #{transr_forward.1} parent=0 // pred_region
    _
  $region25: #{transr_forward.1} parent=0 // pred_fallthru
    _
  // Predicated region
  $region26: #{transr_forward.1} parent=0 // pred_check
    _
  $region27: #{transr_forward.1} parent=0 // pred_check_branch
    %224 = sbr.rel (0) target = $region29
  $region28: #{transr_forward.1} parent=0 // pred_region
    _
  $region29: #{transr_forward.1} parent=0 // pred_fallthru
    _

</llo_original>
